<compile_context>
chip_gen: v7x
topology: tpu7x:2x2x1
jax: 0.10.0
libtpu: 0.0.40
codegen_flags: <defaults>
</compile_context>

<pallas_src>
import math

import jax
import jax.numpy as jnp
from jax.experimental import pallas as pl
from jax.experimental.pallas import tpu as pltpu


_VMEM_LIMIT_BYTES = 48 << 20  # below v7x's 64 MiB physical, above scoped defaults everywhere


# ----------------------------- kernels ---------------------------------------


def _style_mm_kernel(bid_ref, style_ref, z_ref, o_ref):
    # data_n > 1 path: s = batchid @ style ; out = z - s
    # K (= data_n or rep*data_n) is tiny, the MXU has enormous slack; memory bound.
    s = jnp.dot(bid_ref[...], style_ref[...], preferred_element_type=jnp.float32)
    o_ref[...] = (z_ref[...] - s).astype(o_ref.dtype)


def _style_sub_kernel(z_ref, style_ref, o_ref):
    # data_n == 1 path: out = z - style (style row broadcasts over the batch dimension)
    o_ref[...] = (z_ref[...] - style_ref[...]).astype(o_ref.dtype)


# ----------------------------- device / tiling heuristics ---------------------


def _device_tuning():
    """Per-generation (per-stream byte target, tensorcores-per-chip)."""
    kind = ""
    try:
        kind = jax.devices()[0].device_kind.lower()
    except Exception:
        pass
    if "v7" in kind or "7x" in kind:
        return 8 << 20, 2      # 3.2 TB/s per TC: big blocks amortize per-step overhead
    if "v6" in kind:
        return 4 << 20, 1
    return 2 << 20, 1          # v5e / unknown: 2 MiB is already >> per-step overhead


def _pick_tb(rows, cols, target_bytes, num_cores):
    """Row-tile size for a (rows, cols) f32 stream: full-width blocks only.

    tb targets `target_bytes` of the dominant stream per grid step (no hard row cap),
    is a multiple of 8 (or the full batch), and keeps the double-buffered footprint
    (in + out, 2 buffers each ~= 4x tile) under the VMEM limit with headroom.
    """
    row_bytes = max(cols * 4, 1)
    max_tile_bytes = min(target_bytes, (_VMEM_LIMIT_BYTES - (8 << 20)) // 4)
    tb = max(8, max_tile_bytes // row_bytes)
    tb = (tb // 8) * 8
    tb = max(tb, 8)
    if tb >= rows:
        tb = rows
        # Whole batch fits in one tile: on a 2-TC chip (v7x) split into two similarly
        # sized tiles when cheap so the megacore has parallel work to shard.
        if num_cores >= 2:
            half = rows // 2
            if rows % 16 == 0 and half >= 8 and half * row_bytes >= (256 << 10):
                tb = half
    return int(tb)


def _lcm(a, b):
    return a * b // math.gcd(a, b)


# ----------------------------- lane-dense packing ------------------------------


def _pack_rows(arr, rep):
    """(B, C) -> (ceil(B/rep), rep*C); pads with zero rows if B % rep != 0.

    Metadata-only when B % rep == 0 (row-major contiguous input)."""
    B, C = arr.shape
    pad = (-B) % rep
    if pad:
        arr = jnp.pad(arr, ((0, pad), (0, 0)))
    return arr.reshape((B + pad) // rep, rep * C)


def _unpack_rows(packed, B, C):
    out = packed.reshape(-1, C)
    if out.shape[0] != B:
        out = out[:B]
    return out


def _block_diag_style(style, rep):
    """(K, C) -> (rep*K, rep*C) block-diagonal matrix with `style` on the diagonal."""
    K, C = style.shape
    eye = jnp.eye(rep, dtype=style.dtype)
    bd = jnp.einsum("ij,kc->ikjc", eye, style)     # (rep, K, rep, C)
    return bd.reshape(rep * K, rep * C)


def _packing_plan(z_dim, data_n):
    """Return rep (>1) if a lane-dense repack is worthwhile, else 1."""
    if z_dim % 128 == 0:
        return 1
    L = _lcm(z_dim, 128)
    rep = L // z_dim
    # Keep the repacked style / batchid tiny; bail out for pathological z_dim.
    if rep > 64 or rep * data_n > 1024 or rep * data_n * L * 4 > (4 << 20):
        return 1
    return rep


# ----------------------------- pallas_call wrappers -----------------------------


def _elementwise_sub(z2, style_row, *, target_bytes, num_cores):
    """out = z2 - style_row; z2: (R, C), style_row: (1, C)."""
    R, C = z2.shape
    tb = _pick_tb(R, C, target_bytes, num_cores)
    grid = (pl.cdiv(R, tb),)
    bytes_accessed = 2 * R * C * 4 + C * 4
    return pl.pallas_call(
        _style_sub_kernel,
        out_shape=jax.ShapeDtypeStruct((R, C), z2.dtype),
        grid_spec=pltpu.PrefetchScalarGridSpec(
            num_scalar_prefetch=0,
            grid=grid,
            in_specs=[
                pl.BlockSpec((tb, C), lambda i: (i, 0)),   # z row slab (full width)
                pl.BlockSpec((1, C), lambda i: (0, 0)),    # style row, stays resident
            ],
            out_specs=pl.BlockSpec((tb, C), lambda i: (i, 0)),
        ),
        compiler_params=pltpu.CompilerParams(
            dimension_semantics=("parallel",),
            vmem_limit_bytes=_VMEM_LIMIT_BYTES,
        ),
        cost_estimate=pl.CostEstimate(
            flops=int(R * C), transcendentals=0, bytes_accessed=int(bytes_accessed)
        ),
    )(z2, style_row)


def _fused_mm_sub(batchid, style, z, *, target_bytes, num_cores):
    """out = z - batchid @ style; z: (B, C), batchid: (B, K), style: (K, C)."""
    B, C = z.shape
    K = style.shape[0]
    tb = _pick_tb(B, C, target_bytes, num_cores)
    grid = (pl.cdiv(B, tb),)
    bytes_accessed = 2 * B * C * 4 + B * K * 4 + K * C * 4
    flops = 2 * B * K * C + B * C
    return pl.pallas_call(
        _style_mm_kernel,
        out_shape=jax.ShapeDtypeStruct((B, C), z.dtype),
        grid_spec=pltpu.PrefetchScalarGridSpec(
            num_scalar_prefetch=0,
            grid=grid,
            in_specs=[
                pl.BlockSpec((tb, K), lambda i: (i, 0)),   # batchid row slab
                pl.BlockSpec((K, C), lambda i: (0, 0)),    # style, stays resident
                pl.BlockSpec((tb, C), lambda i: (i, 0)),   # z row slab (full width)
            ],
            out_specs=pl.BlockSpec((tb, C), lambda i: (i, 0)),
        ),
        compiler_params=pltpu.CompilerParams(
            dimension_semantics=("parallel",),
            vmem_limit_bytes=_VMEM_LIMIT_BYTES,
        ),
        cost_estimate=pl.CostEstimate(
            flops=int(flops), transcendentals=0, bytes_accessed=int(bytes_accessed)
        ),
    )(batchid, style, z)


# ----------------------------- public forward ----------------------------------


def style_block_forward(z, batchid, style):
    """Pallas implementation of StyleBlock.forward.

    z: (B, z_dim), batchid: (B, data_n), style: (data_n, z_dim).
    NOTE: as in the PyTorch module, batchid is ignored when data_n == 1.
    """
    B, z_dim = z.shape
    data_n, z_dim2 = style.shape
    assert z_dim2 == z_dim
    assert batchid.shape == (B, data_n)

    target_bytes, num_cores = _device_tuning()

    if data_n == 1:
        rep = _packing_plan(z_dim, 1)
        if rep > 1:
            # Lane-dense view: z -> (B/rep, L); style row tiled to (1, L).
            L = rep * z_dim
            z_p = _pack_rows(z, rep)
            s_p = jnp.tile(style.reshape(1, z_dim), (1, rep))
            out_p = _elementwise_sub(
                z_p, s_p, target_bytes=target_bytes, num_cores=num_cores
            )
            return _unpack_rows(out_p, B, z_dim)
        return _elementwise_sub(
            z, style.reshape(1, z_dim), target_bytes=target_bytes, num_cores=num_cores
        )

    # data_n > 1:  out = z - batchid @ style (fused matmul + subtract)
    rep = _packing_plan(z_dim, data_n)
    if rep > 1:
        # Lane-dense repack: z -> (B/rep, L), batchid -> (B/rep, rep*data_n),
        # style -> block-diagonal (rep*data_n, L). Unmasked full-lane stores.
        z_p = _pack_rows(z, rep)
        bid_p = _pack_rows(batchid, rep)
        style_bd = _block_diag_style(style, rep)
        out_p = _fused_mm_sub(
            bid_p, style_bd, z_p, target_bytes=target_bytes, num_cores=num_cores
        )
        return _unpack_rows(out_p, B, z_dim)

    return _fused_mm_sub(
        batchid, style, z, target_bytes=target_bytes, num_cores=num_cores
    )


# ----------------------------- parameter init ---------------------------------


def init_style(key, data_n, z_dim):
    # matches reset_parameters: uniform(-1/sqrt(z_dim), 1/sqrt(z_dim))
    stdv = 1.0 / math.sqrt(z_dim)
    return jax.random.uniform(
        key, (data_n, z_dim), dtype=jnp.float32, minval=-stdv, maxval=stdv
    )


# ----------------------------- demo / check ------------------------------------

if __name__ == "__main__":
    key = jax.random.PRNGKey(0)
    keys = jax.random.split(key, 12)

    # ---- multi-batch path (data_n > 1), z_dim < 128 -> lane-dense packed matmul ----
    B, data_n, z_dim = 8, 4, 32
    style = init_style(keys[0], data_n, z_dim)
    z = jax.random.normal(keys[1], (B, z_dim), dtype=jnp.float32)
    ids = jax.random.randint(keys[2], (B,), 0, data_n)
    batchid = jax.nn.one_hot(ids, data_n, dtype=jnp.float32)
    out = jax.block_until_ready(style_block_forward(z, batchid, style))
    ref = z - batchid @ style
    assert jnp.allclose(out, ref, atol=1e-5, rtol=1e-5), "mismatch (n>1, packed)"

    # ---- same path but B not a multiple of rep -> exercises the row padding ----
    B3 = 10
    z3 = jax.random.normal(keys[3], (B3, z_dim), dtype=jnp.float32)
    ids3 = jax.random.randint(keys[4], (B3,), 0, data_n)
    batchid3 = jax.nn.one_hot(ids3, data_n, dtype=jnp.float32)
    out3 = jax.block_until_ready(style_block_forward(z3, batchid3, style))
    ref3 = z3 - batchid3 @ style
    assert jnp.allclose(out3, ref3, atol=1e-5, rtol=1e-5), "mismatch (n>1, padded pack)"

    # ---- single-batch path (data_n == 1), packed elementwise ----
    style1 = init_style(keys[5], 1, z_dim)
    z1 = jax.random.normal(keys[6], (B, z_dim), dtype=jnp.float32)
    batchid1 = jnp.ones((B, 1), dtype=jnp.float32)  # ignored by the n==1 branch
    out1 = jax.block_until_ready(style_block_forward(z1, batchid1, style1))
    ref1 = z1 - style1
    assert jnp.allclose(out1, ref1, atol=1e-5, rtol=1e-5), "mismatch (n==1 path)"

    # ---- multi-batch path, z_dim multiple of 128 -> direct (unpacked) row-slab path ----
    B2, data_n2, z_dim2 = 64, 4, 256
    style2 = init_style(keys[7], data_n2, z_dim2)
    z2 = jax.random.normal(keys[8], (B2, z_dim2), dtype=jnp.float32)
    ids2 = jax.random.randint(keys[9], (B2,), 0, data_n2)
    batchid2 = jax.nn.one_hot(ids2, data_n2, dtype=jnp.float32)
    out2 = jax.block_until_ready(style_block_forward(z2, batchid2, style2))
    ref2 = z2 - batchid2 @ style2
    assert jnp.allclose(out2, ref2, atol=1e-5, rtol=1e-5), "mismatch (n>1, unpacked)"

    print("KERNEL_OK")
</pallas_src>

<mosaic_0001>
module attributes {stable_mosaic.version = 11 : i64} {
  func.func @_style_mm_kernel(%arg0: i32, %arg1: memref<2x16xf32, #tpu.memory_space<vmem>>, %arg2: memref<16x128xf32, #tpu.memory_space<vmem>>, %arg3: memref<2x128xf32, #tpu.memory_space<vmem>>, %arg4: memref<2x128xf32, #tpu.memory_space<vmem>>) attributes {dimension_semantics = [#tpu.dimension_semantics<parallel>], iteration_bounds = array<i64: 1>, scalar_prefetch = 0 : i64, scratch_operands = 0 : i64, tpu.core_type = #tpu.core_type<tc>, window_params = [{transform_indices = @transform_0, window_bounds = array<i64: 2, 16>}, {pipeline_mode = #tpu.pipeline_mode<synchronous>, transform_indices = @transform_1, window_bounds = array<i64: 16, 128>}, {transform_indices = @transform_2, window_bounds = array<i64: 2, 128>}, {transform_indices = @transform_3, window_bounds = array<i64: 2, 128>}]} {
    %c0 = arith.constant 0 : index
    %c0_0 = arith.constant 0 : index
    %0 = vector.load %arg1[%c0, %c0_0] : memref<2x16xf32, #tpu.memory_space<vmem>>, vector<2x16xf32>
    %c0_1 = arith.constant 0 : index
    %c0_2 = arith.constant 0 : index
    %1 = vector.load %arg2[%c0_1, %c0_2] : memref<16x128xf32, #tpu.memory_space<vmem>>, vector<16x128xf32>
    %cst = arith.constant dense<0.000000e+00> : vector<2x128xf32>
    %2 = tpu.matmul %0, %1, %cst {dimension_numbers = #tpu.dot_dimension_numbers<[1], [0], [0], [1], [0, 0, 1, 1], [], []>} : vector<2x16xf32>, vector<16x128xf32>, vector<2x128xf32> -> vector<2x128xf32>
    %c0_3 = arith.constant 0 : index
    %c0_4 = arith.constant 0 : index
    %3 = vector.load %arg3[%c0_3, %c0_4] : memref<2x128xf32, #tpu.memory_space<vmem>>, vector<2x128xf32>
    %4 = arith.subf %3, %2 : vector<2x128xf32>
    %c0_5 = arith.constant 0 : index
    %c0_6 = arith.constant 0 : index
    %5 = vector.load %arg4[%c0_5, %c0_6] : memref<2x128xf32, #tpu.memory_space<vmem>>, vector<2x128xf32>
    tpu.vector_store %arg4[%c0_5, %c0_6], %4 {strides = array<i32>} : memref<2x128xf32, #tpu.memory_space<vmem>>, vector<2x128xf32>,
    return
  }
  func.func @transform_0(%arg0: i32) -> (i32, i32) {
    %c0_i32 = arith.constant 0 : i32
    %c0_i32_0 = arith.constant 0 : i32
    return %arg0, %c0_i32 : i32, i32
  }
  func.func @transform_1(%arg0: i32) -> (i32, i32) {
    %c0_i32 = arith.constant 0 : i32
    %c0_i32_0 = arith.constant 0 : i32
    %c0_i32_1 = arith.constant 0 : i32
    return %c0_i32, %c0_i32_0 : i32, i32
  }
  func.func @transform_2(%arg0: i32) -> (i32, i32) {
    %c0_i32 = arith.constant 0 : i32
    %c0_i32_0 = arith.constant 0 : i32
    return %arg0, %c0_i32 : i32, i32
  }
  func.func @transform_3(%arg0: i32) -> (i32, i32) {
    %c0_i32 = arith.constant 0 : i32
    %c0_i32_0 = arith.constant 0 : i32
    return %arg0, %c0_i32 : i32, i32
  }
}

</mosaic_0001>

<llo_original>
// kernel: tpu_custom_call.1
$region0: #{tpu_custom_call.1}
  #allocation0 [shape = 'u32[]', space=smem, size = 0x4, offset = 0x4, fixed_abs, tag = 'smem constant byte address 0x4 - core index']
  #allocation1 [shape = 'u32[144,128]{1,0:T(1,128)}', space=vmem, size = 0x12000, scoped, tag = 'internal scratch']
  %s0 = inlined_call_operand.hbm [shape: f32[2,16], index: 0, kind: input, shape index: {}]
  %s1 = inlined_call_operand.hbm [shape: f32[16,128], index: 1, kind: input, shape index: {}]
  %s2 = inlined_call_operand.vmem [shape: f32[2,128], index: 2, kind: input, shape index: {}]
  %s3 = inlined_call_operand.hbm [shape: f32[2,128], index: 3, kind: output, shape index: {}]
  %s4 = sld [smem:[#allocation0]]
  $region30: #{tpu_custom_call.1} parent=0
    _
  %s6 = ssub.s32 1, %s4
  %s7 = scalar_select 0, %s6, %s4
  $region1: #{tpu_custom_call.1} parent=0
    #allocation2 [shape = 'u8[1024]{0}', space=vmem, size = 0x400, scoped, tag = 'input window, operand 0, single buffered']
    #allocation3 [shape = 's32[1]{0}', space=sflag, size = 0x4, scoped, tag = 'scoped memory for tpu_custom_call.1']
    #allocation4 [shape = 's32[1]{0}', space=sflag, size = 0x4, scoped, tag = 'scoped memory for tpu_custom_call.1']
    #allocation5 [shape = 'u8[8192]{0}', space=vmem, size = 0x2000, scoped, tag = 'input window, operand 1, single buffered']
    #allocation6 [shape = 's32[1]{0}', space=sflag, size = 0x4, scoped, tag = 'scoped memory for tpu_custom_call.1']
    #allocation7 [shape = 'u8[1024]{0}', space=vmem, size = 0x400, scoped, tag = 'output window, operand 0, single buffered']
    %8 = vsyncpa [#allocation3], 0
    %9 = vsyncpa [#allocation6], 0
    %10 = vsyncpa [#allocation4], 0
    // Predicated region
    $region2: #{tpu_custom_call.1} parent=1 // pred_check
      _
    $region3: #{tpu_custom_call.1} parent=1 // pred_check_branch
      %12 = sbr.rel (0) target = $region5
    $region4: #{tpu_custom_call.1} parent=1 // pred_region
      %s14 = ssub.s32 32, 32
      %15 = vsyncadd [#allocation3], %s14
      %s17 = sshll.u32 [#allocation2], 4
      %s18 = int_to_ptr.vmem [resolvable:$true] %s17
      %20 = dma.hbm_to_vmem [thread:$0]  %s0, 32, %s18, [#allocation3]
    $region5: #{tpu_custom_call.1} parent=1 // pred_fallthru
      _
    // Predicated region
    $region6: #{tpu_custom_call.1} parent=1 // pred_check
      _
    $region7: #{tpu_custom_call.1} parent=1 // pred_check_branch
      %22 = sbr.rel (0) target = $region9
    $region8: #{tpu_custom_call.1} parent=1 // pred_region
      %s24 = ssub.s32 256, 256
      %25 = vsyncadd [#allocation6], %s24
      %s26 = sshll.u32 [#allocation5], 4
      %s27 = int_to_ptr.vmem [resolvable:$true] %s26
      %32 = dma.hbm_to_vmem [thread:$0]  %s1, 256, %s27, [#allocation6], 128, 128, 8
    $region9: #{tpu_custom_call.1} parent=1 // pred_fallthru
      _
    // Predicated region
    $region10: #{tpu_custom_call.1} parent=1 // pred_check
      _
    $region11: #{tpu_custom_call.1} parent=1 // pred_check_branch
      %34 = sbr.rel (0) target = $region13
    $region12: #{tpu_custom_call.1} parent=1 // pred_region
      _
    $region13: #{tpu_custom_call.1} parent=1 // pred_fallthru
      _
    // Predicated region
    $region14: #{tpu_custom_call.1} parent=1 // pred_check
      _
    $region15: #{tpu_custom_call.1} parent=1 // pred_check_branch
      %36 = sbr.rel (0) target = $region17
    $region16: #{tpu_custom_call.1} parent=1 // pred_region
      %37 = dma.done [#allocation3], 32
    $region17: #{tpu_custom_call.1} parent=1 // pred_fallthru
      _
    // Predicated region
    $region18: #{tpu_custom_call.1} parent=1 // pred_check
      _
    $region19: #{tpu_custom_call.1} parent=1 // pred_check_branch
      %39 = sbr.rel (0) target = $region21
    $region20: #{tpu_custom_call.1} parent=1 // pred_region
      %40 = dma.done [#allocation6], 256
    $region21: #{tpu_custom_call.1} parent=1 // pred_fallthru
      _
    %v41 = vld [vmem:[#allocation2] sm:$0x3]
    %v42 = vld [vmem:[#allocation5] sm:$0xff]
    %v43 = vld [vmem:[#allocation5 + $0x8] sm:$0xff]
    %vm44 = vcmask 130048
    %v46 = vsel %vm44, %v41, 0
    %48 = vmatprep.subr.mxu0 0.0
    %49 = vmatpush1.msra.mxu0 %v42
    %50 = vmatprep.subr.mxu0 0.0
    %51 = vmatpush1.msra.mxu0 %v43
    %52 = vmatprep.subr.mxu0 0.0
    %53 = vmatpush1.msra.mxu0 0.0
    %54 = vmatprep.subr.mxu0 0.0
    %55 = vmatpush1.msra.mxu0 0.0
    %56 = vmatprep.subr.mxu0 0.0
    %57 = vmatpush1.msra.mxu0 0.0
    %58 = vmatprep.subr.mxu0 0.0
    %59 = vmatpush1.msra.mxu0 0.0
    %60 = vmatprep.subr.mxu0 0.0
    %61 = vmatpush1.msra.mxu0 0.0
    %62 = vmatprep.subr.mxu0 0.0
    %63 = vmatpush1.msra.mxu0 0.0
    %64 = vmatprep.subr.mxu0 0.0
    %65 = vmatpush1.msra.mxu0 0.0
    %66 = vmatprep.subr.mxu0 0.0
    %67 = vmatpush1.msra.mxu0 0.0
    %68 = vmatprep.subr.mxu0 0.0
    %69 = vmatpush1.msra.mxu0 0.0
    %70 = vmatprep.subr.mxu0 0.0
    %71 = vmatpush1.msra.mxu0 0.0
    %72 = vmatprep.subr.mxu0 0.0
    %73 = vmatpush1.msra.mxu0 0.0
    %74 = vmatprep.subr.mxu0 0.0
    %75 = vmatpush1.msra.mxu0 0.0
    %76 = vmatprep.subr.mxu0 0.0
    %77 = vmatpush1.msra.mxu0 0.0
    %78 = vmatprep.subr.mxu0 0.0
    %79 = vmatpush1.msra.mxu0 0.0
    %80 = vmatprep.subr.mxu0 0.0
    %81 = vmatpush1.msra.mxu0 0.0
    %82 = vmatprep.subr.mxu0 0.0
    %83 = vmatpush1.msra.mxu0 0.0
    %84 = vmatprep.subr.mxu0 0.0
    %85 = vmatpush1.msra.mxu0 0.0
    %86 = vmatprep.subr.mxu0 0.0
    %87 = vmatpush1.msra.mxu0 0.0
    %88 = vmatprep.subr.mxu0 0.0
    %89 = vmatpush1.msra.mxu0 0.0
    %90 = vmatprep.subr.mxu0 0.0
    %91 = vmatpush1.msra.mxu0 0.0
    %92 = vmatprep.subr.mxu0 0.0
    %93 = vmatpush1.msra.mxu0 0.0
    %94 = vmatprep.subr.mxu0 0.0
    %95 = vmatpush1.msra.mxu0 0.0
    %96 = vmatprep.subr.mxu0 0.0
    %97 = vmatpush1.msra.mxu0 0.0
    %98 = vmatprep.subr.mxu0 0.0
    %99 = vmatpush1.msra.mxu0 0.0
    %100 = vmatprep.subr.mxu0 0.0
    %101 = vmatpush1.msra.mxu0 0.0
    %102 = vmatprep.subr.mxu0 0.0
    %103 = vmatpush1.msra.mxu0 0.0
    %104 = vmatprep.subr.mxu0 0.0
    %105 = vmatpush1.msra.mxu0 0.0
    %106 = vmatprep.subr.mxu0 0.0
    %107 = vmatpush1.msra.mxu0 0.0
    %108 = vmatprep.subr.mxu0 0.0
    %109 = vmatpush1.msra.mxu0 0.0
    %110 = vmatprep.subr.mxu0 0.0
    %111 = vmatpush1.msra.mxu0 0.0
    %112 = vmatprep.mubr.f32.mxu0 0.0
    %113 = vmatmul.mubr.f32.gmra.mrb[0].mxu0 %v46
    %v114 = vpop.f32.mrb[0].mxu0
    %v115 = vadd.f32 0.0, %v114
    %v116 = vpop.f32.mrb[0].mxu0
    %117 = vdwg.mxu0
    %v118 = vld [vmem:[%s2] sm:$0x3]
    %v119 = vsub.f32 %v118, %v115
    %120 = vst [vmem:[#allocation7] sm:$0x3] %v119
    // Predicated region
    $region22: #{tpu_custom_call.1} parent=1 // pred_check
      _
    $region23: #{tpu_custom_call.1} parent=1 // pred_check_branch
      %122 = sbr.rel (0) target = $region25
    $region24: #{tpu_custom_call.1} parent=1 // pred_region
      %s124 = ssub.s32 32, 32
      %125 = vsyncadd [#allocation4], %s124
      %s127 = sshll.u32 [#allocation7], 4
      %s128 = int_to_ptr.vmem [resolvable:$true] %s127
      %130 = dma.vmem_to_hbm [thread:$0]  %s128, 32, %s3, [#allocation4]
    $region25: #{tpu_custom_call.1} parent=1 // pred_fallthru
      _
    // Predicated region
    $region26: #{tpu_custom_call.1} parent=1 // pred_check
      _
    $region27: #{tpu_custom_call.1} parent=1 // pred_check_branch
      %132 = sbr.rel (0) target = $region29
    $region28: #{tpu_custom_call.1} parent=1 // pred_region
      %133 = dma.done [#allocation4], 32
    $region29: #{tpu_custom_call.1} parent=1 // pred_fallthru
      _
    %134 = vsyncpa [#allocation3], 1
    %135 = vsyncpa [#allocation6], 1
    %136 = vsyncpa [#allocation4], 1

</llo_original>
